<compile_context>
chip_gen: v7x
topology: tpu7x:2x2x1
jax: 0.10.0
libtpu: 0.0.40
codegen_flags: <defaults>
</compile_context>

<pallas_src>
import functools
import re

import jax
import jax.numpy as jnp
from jax.experimental import pallas as pl
from jax.experimental.pallas import tpu as pltpu

LANES = 128
SUBLANES = 8
VREG_ELEMS = SUBLANES * LANES            # 1024
TARGET_BLOCK_BYTES = 1 << 20             # ~1 MiB of input per block (double-buffered)
VMEM_LIMIT_BYTES = 32 * 1024 * 1024      # raise v5e's 16 MiB scoped default; <= v7x physical


def _tpu_generation() -> int:
    """Best-effort TPU generation from device_kind ('TPU v5 lite' -> 5). 0 = unknown."""
    try:
        kind = jax.devices()[0].device_kind
        m = re.search(r"(\d+)", kind)
        if m:
            return int(m.group(1))
    except Exception:
        pass
    return 0


def _gen_adv_loss_kernel(x_ref, out_ref, *, valid_rows, tile_rows,
                         tiles_per_chunk, compute_dtype, needs_mask):
    c = pl.program_id(0)      # chunk (one per TensorCore when CORE_PARALLEL)
    t = pl.program_id(1)      # tile within chunk (reduction axis)

    @pl.when(t == 0)
    def _init():
        out_ref[...] = jnp.zeros(out_ref.shape, out_ref.dtype)

    # BCEWithLogits(x, target=1) == softplus(-x), numerically stable form.
    # bf16 math only on chips with a bf16 EUP (gated in the wrapper);
    # cross-tile accumulation is always f32.
    x = x_ref[...].astype(compute_dtype)
    loss = (jnp.maximum(-x, 0.0) + jnp.log1p(jnp.exp(-jnp.abs(x)))).astype(jnp.float32)

    def _fold(v):
        # (tile_rows, 128) -> stack of vregs -> pure-VPU vreg adds into the
        # resident (1, 8, 128) output block; hides under the input DMA.
        out_ref[...] += v.reshape(-1, SUBLANES, LANES).sum(axis=0, keepdims=True)

    if needs_mask:
        # Logical (unclamped) first row covered by this grid step.
        start_row = (c * tiles_per_chunk + t) * tile_rows

        @pl.when(start_row + tile_rows <= valid_rows)
        def _full_tile():
            _fold(loss)

        @pl.when(start_row + tile_rows > valid_rows)
        def _edge_tile():
            row = jax.lax.broadcasted_iota(jnp.int32, loss.shape, 0)
            # where-select (NOT multiply-by-mask): garbage rows may be NaN/Inf.
            _fold(jnp.where((start_row + row) < valid_rows, loss, 0.0))
    else:
        _fold(loss)


def _launch(slab, bulk_rows, *, tile_rows, num_chunks, core_parallel, compute_dtype):
    tiles_total = pl.cdiv(bulk_rows, tile_rows)
    tiles_per_chunk = pl.cdiv(tiles_total, num_chunks)
    needs_mask = (bulk_rows % tile_rows != 0) or (tiles_total % num_chunks != 0)
    last_block = tiles_total - 1

    if needs_mask:
        def in_index_map(c, t):
            # Clamp so every DMA stays in-bounds; the kernel masks overlap rows.
            return (jnp.minimum(c * tiles_per_chunk + t, last_block), 0)
    else:
        def in_index_map(c, t):
            return (c * tiles_per_chunk + t, 0)

    kernel = functools.partial(
        _gen_adv_loss_kernel,
        valid_rows=bulk_rows,
        tile_rows=tile_rows,
        tiles_per_chunk=tiles_per_chunk,
        compute_dtype=compute_dtype,
        needs_mask=needs_mask,
    )

    bulk_elems = bulk_rows * LANES
    if core_parallel:
        dim_sem = (pltpu.CORE_PARALLEL, pltpu.ARBITRARY)
    else:
        dim_sem = ("arbitrary", "arbitrary")

    return pl.pallas_call(
        kernel,
        out_shape=jax.ShapeDtypeStruct((num_chunks, SUBLANES, LANES), jnp.float32),
        grid_spec=pltpu.PrefetchScalarGridSpec(
            num_scalar_prefetch=0,
            grid=(num_chunks, tiles_per_chunk),
            in_specs=[pl.BlockSpec((tile_rows, LANES), in_index_map)],
            # Lane-dense (1, 8, 128) per-chunk accumulator output; the single
            # cross-lane/sublane reduction is a tiny jnp.sum in the wrapper.
            out_specs=pl.BlockSpec((1, SUBLANES, LANES), lambda c, t: (c, 0, 0)),
        ),
        compiler_params=pltpu.CompilerParams(
            dimension_semantics=dim_sem,
            vmem_limit_bytes=VMEM_LIMIT_BYTES,
        ),
        cost_estimate=pl.CostEstimate(
            flops=6 * bulk_elems,
            transcendentals=2 * bulk_elems,
            bytes_accessed=bulk_elems * slab.dtype.itemsize
                           + num_chunks * SUBLANES * LANES * 4,
        ),
    )(slab)


def _softplus_neg_sum(x_f32):
    return jnp.sum(jnp.maximum(-x_f32, 0.0) + jnp.log1p(jnp.exp(-jnp.abs(x_f32))))


def gen_adversarial_loss(fake_disc_out: jax.Array) -> jax.Array:
    """Pallas equivalent of GenAdversarialLoss.forward (mean BCE-with-logits vs. ones)."""
    n = fake_disc_out.size
    flat = fake_disc_out.reshape(-1)              # keep original dtype on the wire

    bulk_rows = (n // VREG_ELEMS) * SUBLANES      # multiple of 8
    bulk_elems = bulk_rows * LANES

    gen = _tpu_generation()
    total = jnp.zeros((), jnp.float32)

    if bulk_rows > 0:
        slab = flat[:bulk_elems].reshape(bulk_rows, LANES)
        itemsize = slab.dtype.itemsize

        # Byte-budgeted block (~1 MiB of input): 2048 rows f32, 4096 rows bf16.
        budget_rows = (TARGET_BLOCK_BYTES // (LANES * itemsize)) // SUBLANES * SUBLANES
        budget_rows = max(SUBLANES, budget_rows)
        tile_rows = min(budget_rows, bulk_rows)   # both multiples of 8
        tiles_total = pl.cdiv(bulk_rows, tile_rows)

        # bf16 softplus only where a bf16 EUP exists (v6e/v7x); f32 otherwise.
        use_bf16_math = (slab.dtype == jnp.bfloat16) and gen >= 6
        compute_dtype = jnp.bfloat16 if use_bf16_math else jnp.float32

        # Real dual-TensorCore sharding requires CORE_PARALLEL (v7x); plain
        # "parallel" does not split cores, so keep a single chunk elsewhere.
        num_chunks = 2 if (gen >= 7 and tiles_total >= 2) else 1
        try:
            partials = _launch(slab, bulk_rows, tile_rows=tile_rows,
                               num_chunks=num_chunks,
                               core_parallel=(num_chunks > 1),
                               compute_dtype=compute_dtype)
        except Exception:
            if num_chunks == 1:
                raise
            # TODO(synk): CORE_PARALLEL rejected on this chip; serial fallback.
            partials = _launch(slab, bulk_rows, tile_rows=tile_rows,
                               num_chunks=1, core_parallel=False,
                               compute_dtype=compute_dtype)
        total = total + jnp.sum(partials)

    if bulk_elems < n:
        # < 1024-element ragged tail: not worth a kernel launch; tiny JAX sum.
        total = total + _softplus_neg_sum(flat[bulk_elems:].astype(jnp.float32))

    return total / jnp.float32(n)


def _reference(fake_disc_out: jax.Array) -> jax.Array:
    x = fake_disc_out.astype(jnp.float32)
    return jnp.mean(jnp.maximum(-x, 0.0) + jnp.log1p(jnp.exp(-jnp.abs(x))))


if __name__ == "__main__":
    key = jax.random.PRNGKey(0)
    k1, k2, k3, k4 = jax.random.split(key, 4)

    # Primary check: typical small NCHW discriminator output.
    x1 = jax.random.normal(k1, (2, 4, 16, 16), dtype=jnp.float32)
    out1 = jax.block_until_ready(gen_adversarial_loss(x1))
    ref1 = _reference(x1)
    assert jnp.allclose(out1, ref1, rtol=1e-5, atol=1e-6), (out1, ref1)

    # Ragged bf16 input: exercises the JAX tail path and (on v6e/v7x) the bf16
    # EUP math path, hence the looser tolerance.
    x2 = (jax.random.normal(k2, (2, 1, 30, 30), dtype=jnp.float32) * 3.0).astype(jnp.bfloat16)
    out2 = jax.block_until_ready(gen_adversarial_loss(x2))
    ref2 = _reference(x2)
    assert jnp.allclose(out2, ref2, rtol=2e-2, atol=2e-2), (out2, ref2)

    # Lane-aligned medium input: single full tile, no masking emitted.
    x3 = jax.random.normal(k3, (2, 3, 160, 160), dtype=jnp.float32)
    out3 = jax.block_until_ready(gen_adversarial_loss(x3))
    ref3 = _reference(x3)
    assert jnp.allclose(out3, ref3, rtol=1e-5, atol=1e-6), (out3, ref3)

    # Multi-tile input with a masked partial edge tile + ragged tail.
    x4 = jax.random.normal(k4, (1, 6, 250, 250), dtype=jnp.float32)
    out4 = jax.block_until_ready(gen_adversarial_loss(x4))
    ref4 = _reference(x4)
    assert jnp.allclose(out4, ref4, rtol=1e-5, atol=1e-5), (out4, ref4)

    print("KERNEL_OK")
</pallas_src>

<mosaic_0001>
module attributes {stable_mosaic.version = 11 : i64} {
  func.func @_gen_adv_loss_kernel(%arg0: i32, %arg1: i32, %arg2: memref<16x128xf32, #tpu.memory_space<vmem>>, %arg3: memref<1x8x128xf32, #tpu.memory_space<vmem>>) attributes {dimension_semantics = [#tpu.dimension_semantics<arbitrary>, #tpu.dimension_semantics<arbitrary>], iteration_bounds = array<i64: 1, 1>, scalar_prefetch = 0 : i64, scratch_operands = 0 : i64, tpu.core_type = #tpu.core_type<tc>, window_params = [{transform_indices = @transform_0, window_bounds = array<i64: 16, 128>}, {transform_indices = @transform_1, window_bounds = array<i64: 1, 8, 128>}]} {
    %c0_i32 = arith.constant 0 : i32
    %0 = arith.cmpi eq, %arg1, %c0_i32 : i32
    %1 = arith.extui %0 : i1 to i32
    %c0_i32_0 = arith.constant 0 : i32
    %2 = arith.cmpi ne, %1, %c0_i32_0 : i32
    scf.if %2 {
      %cst_11 = arith.constant 0.000000e+00 : f32
      %20 = vector.broadcast %cst_11 : f32 to vector<1x8x128xf32>
      %c0_12 = arith.constant 0 : index
      %c0_13 = arith.constant 0 : index
      %c0_14 = arith.constant 0 : index
      %21 = vector.load %arg3[%c0_12, %c0_13, %c0_14] : memref<1x8x128xf32, #tpu.memory_space<vmem>>, vector<1x8x128xf32>
      tpu.vector_store %arg3[%c0_12, %c0_13, %c0_14], %20 {strides = array<i32>} : memref<1x8x128xf32, #tpu.memory_space<vmem>>, vector<1x8x128xf32>,
    } else {
    }
    %c0 = arith.constant 0 : index
    %c0_1 = arith.constant 0 : index
    %3 = vector.load %arg2[%c0, %c0_1] : memref<16x128xf32, #tpu.memory_space<vmem>>, vector<16x128xf32>
    %cst = arith.constant 0.000000e+00 : f32
    %4 = vector.broadcast %cst : f32 to vector<16x128xf32>
    %5 = arith.subf %4, %3 : vector<16x128xf32>
    %cst_2 = arith.constant 0.000000e+00 : f32
    %6 = vector.broadcast %cst_2 : f32 to vector<16x128xf32>
    %7 = arith.maximumf %5, %6 : vector<16x128xf32>
    %8 = math.absf %3 : vector<16x128xf32>
    %cst_3 = arith.constant 0.000000e+00 : f32
    %9 = vector.broadcast %cst_3 : f32 to vector<16x128xf32>
    %10 = arith.subf %9, %8 : vector<16x128xf32>
    %11 = math.exp %10 : vector<16x128xf32>
    %12 = math.log1p %11 : vector<16x128xf32>
    %13 = arith.addf %7, %12 : vector<16x128xf32>
    %c0_4 = arith.constant 0 : index
    %c0_5 = arith.constant 0 : index
    %c0_6 = arith.constant 0 : index
    %14 = vector.load %arg3[%c0_4, %c0_5, %c0_6] : memref<1x8x128xf32, #tpu.memory_space<vmem>>, vector<1x8x128xf32>
    %15 = vector.shape_cast %13 : vector<16x128xf32> to vector<2x8x128xf32>
    %cst_7 = arith.constant dense<0.000000e+00> : vector<8x128xf32>
    %16 = vector.multi_reduction <add>, %15, %cst_7 [0] : vector<2x8x128xf32> to vector<8x128xf32>
    %17 = vector.shape_cast %16 : vector<8x128xf32> to vector<1x8x128xf32>
    %18 = arith.addf %14, %17 : vector<1x8x128xf32>
    %c0_8 = arith.constant 0 : index
    %c0_9 = arith.constant 0 : index
    %c0_10 = arith.constant 0 : index
    %19 = vector.load %arg3[%c0_8, %c0_9, %c0_10] : memref<1x8x128xf32, #tpu.memory_space<vmem>>, vector<1x8x128xf32>
    tpu.vector_store %arg3[%c0_8, %c0_9, %c0_10], %18 {strides = array<i32>} : memref<1x8x128xf32, #tpu.memory_space<vmem>>, vector<1x8x128xf32>,
    return
  }
  func.func @transform_0(%arg0: i32, %arg1: i32) -> (i32, i32) {
    %c1_i32 = arith.constant 1 : i32
    %0 = arith.muli %arg0, %c1_i32 : i32
    %1 = arith.addi %0, %arg1 : i32
    %c0_i32 = arith.constant 0 : i32
    %c0_i32_0 = arith.constant 0 : i32
    return %1, %c0_i32 : i32, i32
  }
  func.func @transform_1(%arg0: i32, %arg1: i32) -> (i32, i32, i32) {
    %c0_i32 = arith.constant 0 : i32
    %c0_i32_0 = arith.constant 0 : i32
    %c0_i32_1 = arith.constant 0 : i32
    return %arg0, %c0_i32, %c0_i32_0 : i32, i32, i32
  }
}

</mosaic_0001>

<llo_original>
// kernel: tpu_custom_call.1
$region0: #{tpu_custom_call.1}
  #allocation0 [shape = 'u32[]', space=smem, size = 0x4, offset = 0x4, fixed_abs, tag = 'smem constant byte address 0x4 - core index']
  #allocation1 [shape = 'u32[144,128]{1,0:T(1,128)}', space=vmem, size = 0x12000, scoped, tag = 'internal scratch']
  %s0 = inlined_call_operand.hbm [shape: f32[16,128], index: 0, kind: input, shape index: {}]
  %s1 = inlined_call_operand.hbm [shape: f32[1,8,128], index: 1, kind: output, shape index: {}]
  %s2 = sld [smem:[#allocation0]]
  $region22: #{tpu_custom_call.1} parent=0
    _
  %s4 = ssub.s32 1, %s2
  %s5 = scalar_select 0, %s4, %s2
  $region1: #{tpu_custom_call.1} parent=0
    #allocation2 [shape = 'u8[8192]{0}', space=vmem, size = 0x2000, scoped, tag = 'input window, operand 0, single buffered']
    #allocation3 [shape = 's32[1]{0}', space=sflag, size = 0x4, scoped, tag = 'scoped memory for tpu_custom_call.1']
    #allocation4 [shape = 's32[1]{0}', space=sflag, size = 0x4, scoped, tag = 'scoped memory for tpu_custom_call.1']
    #allocation5 [shape = 'u8[4096]{0}', space=vmem, size = 0x1000, scoped, tag = 'output window, operand 0, single buffered']
    %6 = vsyncpa [#allocation3], 0
    %7 = vsyncpa [#allocation4], 0
    // Predicated region
    $region2: #{tpu_custom_call.1} parent=1 // pred_check
      _
    $region3: #{tpu_custom_call.1} parent=1 // pred_check_branch
      %9 = sbr.rel (0) target = $region5
    $region4: #{tpu_custom_call.1} parent=1 // pred_region
      %s10 = sadd.s32 0, 0
      %s11 = smul.u32 2, %s10
      %s13 = ssub.s32 256, 256
      %14 = vsyncadd [#allocation3], %s13
      %s15 = smul.addr %s11, 128
      %s16 = scalar_lea.hbm %s0, %s15
      %s17 = sshll.u32 [#allocation2], 4
      %s18 = int_to_ptr.vmem [resolvable:$true] %s17
      %23 = dma.hbm_to_vmem [thread:$0]  %s16, 256, %s18, [#allocation3], 128, 128, 8
    $region5: #{tpu_custom_call.1} parent=1 // pred_fallthru
      _
    // Predicated region
    $region6: #{tpu_custom_call.1} parent=1 // pred_check
      _
    $region7: #{tpu_custom_call.1} parent=1 // pred_check_branch
      %25 = sbr.rel (0) target = $region9
    $region8: #{tpu_custom_call.1} parent=1 // pred_region
      %26 = dma.done [#allocation3], 256
    $region9: #{tpu_custom_call.1} parent=1 // pred_fallthru
      _
    %s27 = sadd.s32 0, 0
    %s28 = smul.u32 2, %s27
    %p29 = scmp.eq.s32.totalorder 0, 0
    // Predicated region
    $region10: #{tpu_custom_call.1} parent=1 // pred_check
      %p30 = pneg %p29
    $region11: #{tpu_custom_call.1} parent=1 // pred_check_branch
      %32 = sbr.rel (%p30) target = $region13
    $region12: #{tpu_custom_call.1} parent=1 // pred_region
      %33 = vst [vmem:[#allocation5] sm:$0xff] 0.0
    $region13: #{tpu_custom_call.1} parent=1 // pred_fallthru
      _
    %v34 = vld [vmem:[#allocation2] sm:$0xff]
    %v35 = vld [vmem:[#allocation2 + $0x8] sm:$0xff]
    %v36 = vsub.f32 0.0, %v34
    %v37 = vsub.f32 0.0, %v35
    %v38 = vmax.f32 %v36, 0.0
    %v39 = vmax.f32 %v37, 0.0
    %v40 = vand.u32 2147483647, %v34
    %v41 = vand.u32 2147483647, %v35
    %v42 = vsub.f32 0.0, %v40
    %v43 = vsub.f32 0.0, %v41
    %v44 = vmul.f32 %v42, 1.442695
    %v45 = vpow.pop %v44
    %v46 = vmul.f32 %v43, 1.442695
    %v47 = vpow.pop %v46
    %v48 = vadd.f32 %v45, 1.0
    %v49 = vlog2.pop %v48
    %v50 = vmul.f32 %v49, 0.6931472
    %v51 = vmul.f32 -0.5, %v45
    %v52 = vadd.f32 %v51, 1.0
    %v53 = vmul.f32 %v52, %v45
    %v54 = vand.u32 2147483647, %v45
    %vm55 = vcmp.lt.f32.partialorder %v54, 0.0004427343
    %v56 = vsel %vm55, %v53, %v50
    %v57 = vadd.f32 %v47, 1.0
    %v58 = vlog2.pop %v57
    %v59 = vmul.f32 %v58, 0.6931472
    %v60 = vmul.f32 -0.5, %v47
    %v61 = vadd.f32 %v60, 1.0
    %v62 = vmul.f32 %v61, %v47
    %v63 = vand.u32 2147483647, %v47
    %vm64 = vcmp.lt.f32.partialorder %v63, 0.0004427343
    %v65 = vsel %vm64, %v62, %v59
    %v66 = vadd.f32 %v38, %v56
    %v67 = vadd.f32 %v39, %v65
    %v68 = vld [vmem:[#allocation5] sm:$0xff]
    %v69 = vadd.f32 %v66, %v67
    %v70 = vadd.f32 %v68, %v69
    %71 = vst [vmem:[#allocation5] sm:$0xff] %v70
    // Predicated region
    $region14: #{tpu_custom_call.1} parent=1 // pred_check
      _
    $region15: #{tpu_custom_call.1} parent=1 // pred_check_branch
      %73 = sbr.rel (0) target = $region17
    $region16: #{tpu_custom_call.1} parent=1 // pred_region
      %s75 = ssub.s32 128, 128
      %76 = vsyncadd [#allocation4], %s75
      %s78 = sshll.u32 [#allocation5], 4
      %s79 = int_to_ptr.vmem [resolvable:$true] %s78
      %81 = dma.vmem_to_hbm [thread:$0]  %s79, 128, %s1, [#allocation4]
    $region17: #{tpu_custom_call.1} parent=1 // pred_fallthru
      _
    // Predicated region
    $region18: #{tpu_custom_call.1} parent=1 // pred_check
      _
    $region19: #{tpu_custom_call.1} parent=1 // pred_check_branch
      %83 = sbr.rel (0) target = $region21
    $region20: #{tpu_custom_call.1} parent=1 // pred_region
      %84 = dma.done [#allocation4], 128
    $region21: #{tpu_custom_call.1} parent=1 // pred_fallthru
      _
    %85 = vsyncpa [#allocation3], 1
    %86 = vsyncpa [#allocation4], 1

</llo_original>
